<compile_context>
chip_gen: v6e
topology: v6e:2x2x1
jax: 0.10.0
libtpu: 0.0.40
codegen_flags: <defaults>
</compile_context>

<pallas_src>
import functools

import jax
import jax.numpy as jnp
from jax.experimental import pallas as pl
from jax.experimental.pallas import tpu as pltpu

_MIB = 1 << 20


def _prenorm_local_kernel(x_ref, w_ref, b_ref, o_ref, *, eps, use_mxu):
    # x_ref block: (1, C, T) — channels on sublanes, spatial on lanes.
    x = x_ref[0].astype(jnp.float32)                        # (C, T)
    c = x.shape[0]
    inv_c = 1.0 / c

    # Two-pass LayerNorm statistics over the channel (sublane) axis.
    mean = jnp.sum(x, axis=0, keepdims=True) * inv_c        # (1, T)
    xc = x - mean                                           # (C, T)
    var = jnp.sum(xc * xc, axis=0, keepdims=True) * inv_c   # (1, T)
    inv_std = jax.lax.rsqrt(var + eps)                      # (1, T)
    xn = xc * inv_std                                       # (C, T), f32
    # (gamma/beta are folded into w_ref / b_ref wrapper-side.)

    if use_mxu:
        # fn: pointwise conv == (Cout, Cin) @ (Cin, T) on the MXU.
        # bf16 operands, f32 accumulation.
        y = jnp.dot(w_ref[...], xn.astype(jnp.bfloat16),
                    preferred_element_type=jnp.float32)     # (Cout, T)
    else:
        # Tiny C: the systolic array would be <4% utilized — do unrolled
        # broadcast-FMA on the VPU, keeping everything in f32.
        w = w_ref[...].astype(jnp.float32)                  # (Cout, C)
        cout = w.shape[0]
        y = jnp.zeros((cout, x.shape[1]), jnp.float32)
        for ci in range(c):                                 # static unroll, C small
            y = y + w[:, ci:ci + 1] * xn[ci:ci + 1, :]

    y = y + b_ref[...]                                      # bias (Cout, 1)
    o_ref[0] = y.astype(o_ref.dtype)


def prenorm_local(x_nchw, gamma, beta, conv_w, conv_b, *, eps=1e-5,
                  max_tile_hw=16384):
    """x_nchw: (B, C, H, W). conv_w: (Cout, Cin) from a 1x1 Conv2d. Returns NCHW."""
    B, C, H, W = x_nchw.shape
    Cout, Cin = conv_w.shape
    assert Cin == C, "conv weight must match the channel dim"
    HW = H * W

    in_b = jnp.dtype(x_nchw.dtype).itemsize
    out_b = in_b

    use_mxu = C > 8

    # ---- Generation-aware VMEM budget (v5e/v6e: 128 MiB, v7x: 64 MiB). ----
    vmem_cap = 64 * _MIB                                    # conservative fallback (v7x)
    try:
        vmem_cap = int(pltpu.get_tpu_info().vmem_capacity_bytes)
    except Exception:
        pass

    # Bytes per spatial position: double-buffered HBM tiles + live body temps
    # (x f32, xn f32, y f32, plus the bf16 xn copy on the MXU path).
    per_pos_io = 2 * (C * in_b + Cout * out_b)
    per_pos_tmp = (2 * C + Cout) * 4 + (C * 2 if use_mxu else 0)
    per_pos = per_pos_io + per_pos_tmp

    budget = int(0.60 * vmem_cap)                           # headroom for compiler scratch
    t_cap = max(128, min(max_tile_hw, (budget // per_pos) // 128 * 128))

    # ---- Spatial tiling (no wrapper-side padding). ----
    if HW <= t_cap:
        t_hw = HW                                           # full extent: always a legal block
    else:
        t_hw = t_cap                                        # multiple of 128; ragged tail -> partial final block
    n_hw = pl.cdiv(HW, t_hw)

    # v7x has 2 TensorCores sharded over parallel grid axes: avoid a (1,1) grid.
    if B == 1 and n_hw == 1 and HW >= 256:
        t_hw = max(128, pl.cdiv(pl.cdiv(HW, 2), 128) * 128)
        n_hw = pl.cdiv(HW, t_hw)

    x_flat = x_nchw.reshape(B, C, HW)                       # free reshape, keeps NCHW layout

    # ---- Fold LayerNorm affine into the conv: W' = W*gamma, b' = b + W@beta. ----
    g = gamma.astype(jnp.float32)
    w_f32 = conv_w.astype(jnp.float32)
    w_fold = w_f32 * g[None, :]                             # (Cout, Cin)
    b_fold = (conv_b.astype(jnp.float32)
              + w_f32 @ beta.astype(jnp.float32)).reshape(Cout, 1)

    w_pass = w_fold.astype(jnp.bfloat16) if use_mxu else w_fold
    w_bytes = Cout * C * (2 if use_mxu else 4)

    grid = (B, n_hw)

    # VMEM: double-buffered in/out tiles + body temporaries + resident params.
    needed = (2 * t_hw * (C * in_b + Cout * out_b)
              + t_hw * per_pos_tmp
              + w_bytes + Cout * 4)
    vmem_limit = max(16 * _MIB,
                     min(int(1.25 * needed) + 8 * _MIB, int(0.92 * vmem_cap)))

    cost = pl.CostEstimate(
        flops=2 * B * HW * C * Cout + 7 * B * HW * C,
        transcendentals=B * HW,
        bytes_accessed=B * HW * (C * in_b + Cout * out_b) + w_bytes + Cout * 4,
    )

    out_flat = pl.pallas_call(
        functools.partial(_prenorm_local_kernel, eps=eps, use_mxu=use_mxu),
        out_shape=jax.ShapeDtypeStruct((B, Cout, HW), x_nchw.dtype),
        grid_spec=pltpu.PrefetchScalarGridSpec(
            num_scalar_prefetch=0,
            grid=grid,
            in_specs=[
                pl.BlockSpec((1, C, t_hw), lambda b, j: (b, 0, j)),   # x tile
                pl.BlockSpec((Cout, C), lambda b, j: (0, 0)),         # folded conv weight
                pl.BlockSpec((Cout, 1), lambda b, j: (0, 0)),         # folded conv bias
            ],
            out_specs=pl.BlockSpec((1, Cout, t_hw), lambda b, j: (b, 0, j)),
        ),
        compiler_params=pltpu.CompilerParams(
            dimension_semantics=("parallel", "parallel"),
            vmem_limit_bytes=vmem_limit,
        ),
        cost_estimate=cost,
    )(x_flat, w_pass, b_fold)

    return out_flat.reshape(B, Cout, H, W)


def _reference(x_nchw, gamma, beta, conv_w, conv_b, eps=1e-5):
    # Pure-JAX reference mirroring the PyTorch module.
    x = jnp.transpose(x_nchw, (0, 2, 3, 1)).astype(jnp.float32)   # NHWC
    mean = jnp.mean(x, axis=-1, keepdims=True)
    var = jnp.mean((x - mean) ** 2, axis=-1, keepdims=True)
    xn = (x - mean) / jnp.sqrt(var + eps) * gamma + beta
    xn = jnp.transpose(xn, (0, 3, 1, 2))                          # NCHW
    y = jnp.einsum("bchw,oc->bohw", xn, conv_w.astype(jnp.float32)) + \
        conv_b.astype(jnp.float32)[None, :, None, None]
    return y.astype(x_nchw.dtype)


if __name__ == "__main__":
    key = jax.random.PRNGKey(0)

    # Case 1: tiny channel count (VPU f32 path), B=2, C=4, 16x16.
    B, C, H, W = 2, 4, 16, 16
    kx, kw, kb, key = jax.random.split(key, 4)
    x = jax.random.normal(kx, (B, C, H, W), dtype=jnp.float32)
    gamma = jnp.ones((C,), jnp.float32)       # nn.LayerNorm default init
    beta = jnp.zeros((C,), jnp.float32)
    conv_w = 0.1 * jax.random.normal(kw, (C, C), dtype=jnp.float32)   # (Cout, Cin)
    conv_b = 0.1 * jax.random.normal(kb, (C,), dtype=jnp.float32)

    out = prenorm_local(x, gamma, beta, conv_w, conv_b)
    out = jax.block_until_ready(out)
    ref = _reference(x, gamma, beta, conv_w, conv_b)
    assert out.shape == (B, C, H, W)
    assert jnp.allclose(out, ref, atol=2e-2, rtol=2e-2), "mismatch vs reference (VPU path)"

    # Case 2: larger channel count (MXU bf16 path), B=2, C=32, 8x8.
    B2, C2, H2, W2 = 2, 32, 8, 8
    kx2, kw2, kb2, kg2, kbeta2, key = jax.random.split(key, 6)
    x2 = jax.random.normal(kx2, (B2, C2, H2, W2), dtype=jnp.float32)
    gamma2 = 1.0 + 0.1 * jax.random.normal(kg2, (C2,), dtype=jnp.float32)
    beta2 = 0.1 * jax.random.normal(kbeta2, (C2,), dtype=jnp.float32)
    conv_w2 = 0.1 * jax.random.normal(kw2, (C2, C2), dtype=jnp.float32)
    conv_b2 = 0.1 * jax.random.normal(kb2, (C2,), dtype=jnp.float32)

    out2 = prenorm_local(x2, gamma2, beta2, conv_w2, conv_b2)
    out2 = jax.block_until_ready(out2)
    ref2 = _reference(x2, gamma2, beta2, conv_w2, conv_b2)
    assert out2.shape == (B2, C2, H2, W2)
    # bf16 MXU operands (f32 accumulation) -> looser tolerance than pure f32.
    assert jnp.allclose(out2, ref2, atol=2e-2, rtol=2e-2), "mismatch vs reference (MXU path)"

    print("KERNEL_OK")
</pallas_src>

<mosaic_0001>
module attributes {stable_mosaic.version = 11 : i64} {
  func.func @_prenorm_local_kernel(%arg0: i32, %arg1: i32, %arg2: memref<1x4x256xf32, #tpu.memory_space<vmem>>, %arg3: memref<4x4xf32, #tpu.memory_space<vmem>>, %arg4: memref<4x1xf32, #tpu.memory_space<vmem>>, %arg5: memref<1x4x256xf32, #tpu.memory_space<vmem>>) attributes {dimension_semantics = [#tpu.dimension_semantics<parallel>, #tpu.dimension_semantics<parallel>], iteration_bounds = array<i64: 2, 1>, scalar_prefetch = 0 : i64, scratch_operands = 0 : i64, tpu.core_type = #tpu.core_type<tc>, window_params = [{transform_indices = @transform_0, window_bounds = array<i64: 1, 4, 256>}, {pipeline_mode = #tpu.pipeline_mode<synchronous>, transform_indices = @transform_1, window_bounds = array<i64: 4, 4>}, {pipeline_mode = #tpu.pipeline_mode<synchronous>, transform_indices = @transform_2, window_bounds = array<i64: 4, 1>}, {transform_indices = @transform_3, window_bounds = array<i64: 1, 4, 256>}]} {
    %c0 = arith.constant 0 : index
    %c0_0 = arith.constant 0 : index
    %c0_1 = arith.constant 0 : index
    %0 = vector.load %arg2[%c0, %c0_0, %c0_1] : memref<1x4x256xf32, #tpu.memory_space<vmem>>, vector<1x4x256xf32>
    %1 = vector.shape_cast %0 : vector<1x4x256xf32> to vector<4x256xf32>
    %cst = arith.constant dense<0.000000e+00> : vector<256xf32>
    %2 = vector.multi_reduction <add>, %1, %cst [0] : vector<4x256xf32> to vector<256xf32>
    %3 = vector.shape_cast %2 : vector<256xf32> to vector<1x256xf32>
    %cst_2 = arith.constant 2.500000e-01 : f32
    %4 = vector.broadcast %cst_2 : f32 to vector<1x256xf32>
    %5 = arith.mulf %3, %4 : vector<1x256xf32>
    %6 = vector.broadcast %5 : vector<1x256xf32> to vector<4x256xf32>
    %7 = arith.subf %1, %6 : vector<4x256xf32>
    %8 = arith.mulf %7, %7 : vector<4x256xf32>
    %cst_3 = arith.constant dense<0.000000e+00> : vector<256xf32>
    %9 = vector.multi_reduction <add>, %8, %cst_3 [0] : vector<4x256xf32> to vector<256xf32>
    %10 = vector.shape_cast %9 : vector<256xf32> to vector<1x256xf32>
    %cst_4 = arith.constant 2.500000e-01 : f32
    %11 = vector.broadcast %cst_4 : f32 to vector<1x256xf32>
    %12 = arith.mulf %10, %11 : vector<1x256xf32>
    %cst_5 = arith.constant 9.99999974E-6 : f32
    %13 = vector.broadcast %cst_5 : f32 to vector<1x256xf32>
    %14 = arith.addf %12, %13 : vector<1x256xf32>
    %15 = math.rsqrt %14 : vector<1x256xf32>
    %16 = vector.broadcast %15 : vector<1x256xf32> to vector<4x256xf32>
    %17 = arith.mulf %7, %16 : vector<4x256xf32>
    %c0_6 = arith.constant 0 : index
    %c0_7 = arith.constant 0 : index
    %18 = vector.load %arg3[%c0_6, %c0_7] : memref<4x4xf32, #tpu.memory_space<vmem>>, vector<4x4xf32>
    %cst_8 = arith.constant 0.000000e+00 : f32
    %19 = vector.broadcast %cst_8 : f32 to vector<4x256xf32>
    %20 = vector.extract_strided_slice %18 {offsets = [0, 0], sizes = [4, 1], strides = [1, 1]} : vector<4x4xf32> to vector<4x1xf32>
    %21 = vector.extract_strided_slice %17 {offsets = [0, 0], sizes = [1, 256], strides = [1, 1]} : vector<4x256xf32> to vector<1x256xf32>
    %22 = vector.broadcast %20 : vector<4x1xf32> to vector<4x256xf32>
    %23 = vector.broadcast %21 : vector<1x256xf32> to vector<4x256xf32>
    %24 = arith.mulf %22, %23 : vector<4x256xf32>
    %25 = arith.addf %19, %24 : vector<4x256xf32>
    %26 = vector.extract_strided_slice %18 {offsets = [0, 1], sizes = [4, 1], strides = [1, 1]} : vector<4x4xf32> to vector<4x1xf32>
    %27 = vector.extract_strided_slice %17 {offsets = [1, 0], sizes = [1, 256], strides = [1, 1]} : vector<4x256xf32> to vector<1x256xf32>
    %28 = vector.broadcast %26 : vector<4x1xf32> to vector<4x256xf32>
    %29 = vector.broadcast %27 : vector<1x256xf32> to vector<4x256xf32>
    %30 = arith.mulf %28, %29 : vector<4x256xf32>
    %31 = arith.addf %25, %30 : vector<4x256xf32>
    %32 = vector.extract_strided_slice %18 {offsets = [0, 2], sizes = [4, 1], strides = [1, 1]} : vector<4x4xf32> to vector<4x1xf32>
    %33 = vector.extract_strided_slice %17 {offsets = [2, 0], sizes = [1, 256], strides = [1, 1]} : vector<4x256xf32> to vector<1x256xf32>
    %34 = vector.broadcast %32 : vector<4x1xf32> to vector<4x256xf32>
    %35 = vector.broadcast %33 : vector<1x256xf32> to vector<4x256xf32>
    %36 = arith.mulf %34, %35 : vector<4x256xf32>
    %37 = arith.addf %31, %36 : vector<4x256xf32>
    %38 = vector.extract_strided_slice %18 {offsets = [0, 3], sizes = [4, 1], strides = [1, 1]} : vector<4x4xf32> to vector<4x1xf32>
    %39 = vector.extract_strided_slice %17 {offsets = [3, 0], sizes = [1, 256], strides = [1, 1]} : vector<4x256xf32> to vector<1x256xf32>
    %40 = vector.broadcast %38 : vector<4x1xf32> to vector<4x256xf32>
    %41 = vector.broadcast %39 : vector<1x256xf32> to vector<4x256xf32>
    %42 = arith.mulf %40, %41 : vector<4x256xf32>
    %43 = arith.addf %37, %42 : vector<4x256xf32>
    %c0_9 = arith.constant 0 : index
    %c0_10 = arith.constant 0 : index
    %44 = vector.load %arg4[%c0_9, %c0_10] : memref<4x1xf32, #tpu.memory_space<vmem>>, vector<4x1xf32>
    %45 = vector.broadcast %44 : vector<4x1xf32> to vector<4x256xf32>
    %46 = arith.addf %43, %45 : vector<4x256xf32>
    %c0_11 = arith.constant 0 : index
    %c0_12 = arith.constant 0 : index
    %c0_13 = arith.constant 0 : index
    %47 = vector.load %arg5[%c0_11, %c0_12, %c0_13] : memref<1x4x256xf32, #tpu.memory_space<vmem>>, vector<1x4x256xf32>
    %48 = vector.shape_cast %47 : vector<1x4x256xf32> to vector<4x256xf32>
    %49 = vector.shape_cast %46 : vector<4x256xf32> to vector<1x4x256xf32>
    tpu.vector_store %arg5[%c0_11, %c0_12, %c0_13], %49 {strides = array<i32>} : memref<1x4x256xf32, #tpu.memory_space<vmem>>, vector<1x4x256xf32>,
    return
  }
  func.func @transform_0(%arg0: i32, %arg1: i32) -> (i32, i32, i32) {
    %c0_i32 = arith.constant 0 : i32
    %c0_i32_0 = arith.constant 0 : i32
    return %arg0, %c0_i32, %arg1 : i32, i32, i32
  }
  func.func @transform_1(%arg0: i32, %arg1: i32) -> (i32, i32) {
    %c0_i32 = arith.constant 0 : i32
    %c0_i32_0 = arith.constant 0 : i32
    %c0_i32_1 = arith.constant 0 : i32
    return %c0_i32, %c0_i32_0 : i32, i32
  }
  func.func @transform_2(%arg0: i32, %arg1: i32) -> (i32, i32) {
    %c0_i32 = arith.constant 0 : i32
    %c0_i32_0 = arith.constant 0 : i32
    %c0_i32_1 = arith.constant 0 : i32
    return %c0_i32, %c0_i32_0 : i32, i32
  }
  func.func @transform_3(%arg0: i32, %arg1: i32) -> (i32, i32, i32) {
    %c0_i32 = arith.constant 0 : i32
    %c0_i32_0 = arith.constant 0 : i32
    return %arg0, %c0_i32, %arg1 : i32, i32, i32
  }
}

</mosaic_0001>

<llo_original>
// kernel: tpu_custom_call.1
$region0: #{tpu_custom_call.1}
  #allocation0 [shape = 'u32[]', space=smem, size = 0x4, offset = 0x4, fixed_abs, tag = 'smem constant byte address 0x4 - core index']
  #allocation1 [shape = 'u32[144,128]{1,0:T(1,128)}', space=vmem, size = 0x12000, scoped, tag = 'internal scratch']
  %s0 = inlined_call_operand.hbm [shape: f32[2,4,256], index: 0, kind: input, shape index: {}]
  %s1 = inlined_call_operand.vmem [shape: f32[4,4], index: 1, kind: input, shape index: {}]
  %s2 = inlined_call_operand.vmem [shape: f32[4,1], index: 2, kind: input, shape index: {}]
  %s3 = inlined_call_operand.hbm [shape: f32[2,4,256], index: 3, kind: output, shape index: {}]
  %s4 = sld [smem:[#allocation0]]
  $region49: #{tpu_custom_call.1} parent=0
    _
  %s6 = ssub.s32 1, %s4
  %s7 = scalar_select 0, %s6, %s4
  $region1: #{tpu_custom_call.1} parent=0
    #allocation2 [shape = 'u8[8192]{0}', space=vmem, size = 0x2000, scoped, tag = 'input window, operand 0']
    #allocation3 [shape = 's32[2]{0}', space=sflag, size = 0x8, scoped, tag = 'scoped memory for tpu_custom_call.1']
    #allocation4 [shape = 's32[2]{0}', space=sflag, size = 0x8, scoped, tag = 'scoped memory for tpu_custom_call.1']
    #allocation5 [shape = 'u8[8192]{0}', space=vmem, size = 0x2000, scoped, tag = 'output window, operand 0']
    %8 = vsyncpa [#allocation3], 0
    %s9 = scalar_lea.sflag [#allocation3], 1
    %10 = vsyncpa %s9, 0
    %11 = vsyncpa [#allocation4], 0
    %s12 = scalar_lea.sflag [#allocation4], 1
    %13 = vsyncpa %s12, 0
    loop: start=0, step=1, limit=4
    $region2: #{tpu_custom_call.1} parent=1 // loop_pre_header
      _
    $region3: #{tpu_custom_call.1} parent=1 // loop_header
      %s15 = sphi 0, %s19
      %p16 = scmp.ge.s32.totalorder %s15, 4
      %s22 = sphi 0, %s34
      %s23 = sphi 0, %s30
      %s24 = sphi 0, %s22
      %s25 = sphi 0, %s23
      %s26 = sphi 0, %s24
      %s27 = sphi 0, %s25
      %s39 = sphi 0, %s41
      %s42 = sphi 0, %s39
      %s43 = sphi 0, %s42
      %s59 = sphi 0, %s43
      %s63 = sphi 0, %s63
      %s65 = sphi 0, %s63
      %s66 = sphi 0, %s65
      %s80 = sphi 0, %s66
      %s84 = sphi 0, %s84
      %s86 = sphi 0, %s84
      %s87 = sphi 0, %s86
      %s101 = sphi 0, %s87
      %s109 = sphi 0, %s111
      %s112 = sphi 0, %s109
      %s113 = sphi 0, %s112
      %s129 = sphi 0, %s113
    $region4: #{tpu_custom_call.1} parent=1 // loop_header_branch
      %18 = sbr.rel (%p16) target = $region8
    $region5: #{tpu_custom_call.1} parent=1 // loop_body
      %s20 = ssub.s32 %s15, 1
      %s21 = ssub.s32 %s15, 2
      %s28 = sadd.s32 1, %s23
      %p29 = scmp.ge.s32.totalorder %s28, 1
      %s30 = scalar_select %p29, 0, %s28
      %s31 = sadd.s32 1, %s22
      %s32 = scalar_select %p29, %s31, %s22
      %p33 = scmp.ge.s32.totalorder %s32, 2
      %s34 = scalar_select %p33, 0, %s32
      %s35 = ssub.s32 %s22, %s34
      %s36 = ssub.s32 %s23, %s30
      %s37 = sor.u32 %s35, %s36
      %p38 = scmp.eq.s32.totalorder %s37, 0
      %s40 = sadd.s32 %s39, 1
      %s41 = scalar_select %p38, %s39, %s40
      %p44 = pneg %p38
      %p45 = scmp.eq.s32.totalorder %s15, 1
      %p46 = por %p44, %p45
      %p47 = scmp.ne.s32.totalorder %s39, %s42
      %p48 = scmp.eq.s32.totalorder %s15, 0
      %p49 = por %p47, %p48
      %p50 = scmp.ne.s32.totalorder %s39, %s42
      %p51 = scmp.eq.s32.totalorder %s20, 1
      %p52 = por %p50, %p51
      %p53 = scmp.ne.s32.totalorder %s42, %s43
      %p54 = scmp.eq.s32.totalorder %s20, 0
      %p55 = por %p53, %p54
      %p56 = scmp.ne.s32.totalorder %s42, %s43
      %p57 = scmp.eq.s32.totalorder %s21, 1
      %p58 = por %p56, %p57
      %p60 = scmp.ne.s32.totalorder %s43, %s59
      %p61 = scmp.eq.s32.totalorder %s21, 0
      %p62 = por %p60, %p61
      %s64 = sadd.s32 %s63, 1
      %p67 = scmp.eq.s32.totalorder %s15, 1
      %p68 = scmp.ne.s32.totalorder %s63, %s65
      %p69 = scmp.eq.s32.totalorder %s15, 0
      %p70 = por %p68, %p69
      %p71 = scmp.ne.s32.totalorder %s63, %s65
      %p72 = scmp.eq.s32.totalorder %s20, 1
      %p73 = por %p71, %p72
      %p74 = scmp.ne.s32.totalorder %s65, %s66
      %p75 = scmp.eq.s32.totalorder %s20, 0
      %p76 = por %p74, %p75
      %p77 = scmp.ne.s32.totalorder %s65, %s66
      %p78 = scmp.eq.s32.totalorder %s21, 1
      %p79 = por %p77, %p78
      %p81 = scmp.ne.s32.totalorder %s66, %s80
      %p82 = scmp.eq.s32.totalorder %s21, 0
      %p83 = por %p81, %p82
      %s85 = sadd.s32 %s84, 1
      %p88 = scmp.eq.s32.totalorder %s15, 1
      %p89 = scmp.ne.s32.totalorder %s84, %s86
      %p90 = scmp.eq.s32.totalorder %s15, 0
      %p91 = por %p89, %p90
      %p92 = scmp.ne.s32.totalorder %s84, %s86
      %p93 = scmp.eq.s32.totalorder %s20, 1
      %p94 = por %p92, %p93
      %p95 = scmp.ne.s32.totalorder %s86, %s87
      %p96 = scmp.eq.s32.totalorder %s20, 0
      %p97 = por %p95, %p96
      %p98 = scmp.ne.s32.totalorder %s86, %s87
      %p99 = scmp.eq.s32.totalorder %s21, 1
      %p100 = por %p98, %p99
      %p102 = scmp.ne.s32.totalorder %s87, %s101
      %p103 = scmp.eq.s32.totalorder %s21, 0
      %p104 = por %p102, %p103
      %s105 = ssub.s32 %s22, %s34
      %s106 = ssub.s32 %s23, %s30
      %s107 = sor.u32 %s105, %s106
      %p108 = scmp.eq.s32.totalorder %s107, 0
      %s110 = sadd.s32 %s109, 1
      %s111 = scalar_select %p108, %s109, %s110
      %p114 = pneg %p108
      %p115 = scmp.eq.s32.totalorder %s15, 1
      %p116 = por %p114, %p115
      %p117 = scmp.ne.s32.totalorder %s109, %s112
      %p118 = scmp.eq.s32.totalorder %s15, 0
      %p119 = por %p117, %p118
      %p120 = scmp.ne.s32.totalorder %s109, %s112
      %p121 = scmp.eq.s32.totalorder %s20, 1
      %p122 = por %p120, %p121
      %p123 = scmp.ne.s32.totalorder %s112, %s113
      %p124 = scmp.eq.s32.totalorder %s20, 0
      %p125 = por %p123, %p124
      %p126 = scmp.ne.s32.totalorder %s112, %s113
      %p127 = scmp.eq.s32.totalorder %s21, 1
      %p128 = por %p126, %p127
      %p130 = scmp.ne.s32.totalorder %s113, %s129
      %p131 = scmp.eq.s32.totalorder %s21, 0
      %p132 = por %p130, %p131
      %p133 = scmp.le.s32.totalorder 1, %s15
      %p134 = scmp.lt.s32.totalorder %s15, 3
      %p135 = pnand %p133, %p134
      %p136 = pneg %p135
      // Predicated region
      $region9: #{tpu_custom_call.1} parent=5 // pred_check
        _
      $region10: #{tpu_custom_call.1} parent=5 // pred_check_branch
        %138 = sbr.rel (%p135) target = $region12
      $region11: #{tpu_custom_call.1} parent=5 // pred_region
        %s139 = ssub.s32 %s15, 1
        // Predicated region
        $region13: #{tpu_custom_call.1} parent=11 // pred_check
          %p140 = pneg %p76
        $region14: #{tpu_custom_call.1} parent=11 // pred_check_branch
          %142 = sbr.rel (%p140) target = $region16
        $region15: #{tpu_custom_call.1} parent=11 // pred_region
          _
        $region16: #{tpu_custom_call.1} parent=11 // pred_fallthru
          _
        // Predicated region
        $region17: #{tpu_custom_call.1} parent=11 // pred_check
          %p143 = pneg %p97
        $region18: #{tpu_custom_call.1} parent=11 // pred_check_branch
          %145 = sbr.rel (%p143) target = $region20
        $region19: #{tpu_custom_call.1} parent=11 // pred_region
          _
        $region20: #{tpu_custom_call.1} parent=11 // pred_fallthru
          _
      $region12: #{tpu_custom_call.1} parent=5 // pred_fallthru
        _
      %p146 = scmp.lt.s32.totalorder %s15, 2
      // Predicated region
      $region21: #{tpu_custom_call.1} parent=5 // pred_check
        %p147 = pneg %p146
      $region22: #{tpu_custom_call.1} parent=5 // pred_check_branch
        %149 = sbr.rel (%p147) target = $region24
      $region23: #{tpu_custom_call.1} parent=5 // pred_region
        // Predicated region
        $region25: #{tpu_custom_call.1} parent=23 // pred_check
          %p150 = pneg %p49
        $region26: #{tpu_custom_call.1} parent=23 // pred_check_branch
          %152 = sbr.rel (%p150) target = $region28
        $region27: #{tpu_custom_call.1} parent=23 // pred_region
          %s153 = sand.u32 %s39, 1
          %s154 = scalar_lea.sflag [#allocation3], %s153
          %s155 = sand.u32 %s39, 1
          %s156 = smul.addr %s155, 8
          %s157 = scalar_lea.vmem [#allocation2], %s156
          %s158 = smul.u32 2, %s23
          %s160 = ssub.s32 128, 128
          %161 = vsyncadd %s154, %s160
          %s162 = smul.addr %s22, 2
          %s163 = sadd.s32 %s158, %s162
          %s164 = smul.addr %s163, 64
          %s165 = scalar_lea.hbm %s0, %s164
          %s167 = sshll.u32 %s157, 4
          %s168 = int_to_ptr.vmem [resolvable:$true] %s167
          %170 = dma.hbm_to_vmem [thread:$0]  %s165, 128, %s168, %s154
        $region28: #{tpu_custom_call.1} parent=23 // pred_fallthru
          _
      $region24: #{tpu_custom_call.1} parent=5 // pred_fallthru
        _
      %p171 = scmp.le.s32.totalorder 1, %s15
      %p172 = scmp.lt.s32.totalorder %s15, 3
      %p173 = pnand %p171, %p172
      %p174 = pneg %p173
      // Predicated region
      $region29: #{tpu_custom_call.1} parent=5 // pred_check
        _
      $region30: #{tpu_custom_call.1} parent=5 // pred_check_branch
        %176 = sbr.rel (%p173) target = $region32
      $region31: #{tpu_custom_call.1} parent=5 // pred_region
        %s177 = ssub.s32 %s15, 1
        %s178 = sand.u32 %s42, 1
        %s179 = scalar_lea.sflag [#allocation3], %s178
        %s180 = sand.u32 %s42, 1
        %s181 = smul.addr %s180, 8
        %s182 = scalar_lea.vmem [#allocation2], %s181
        // Predicated region
        $region33: #{tpu_custom_call.1} parent=31 // pred_check
          %p183 = pneg %p55
        $region34: #{tpu_custom_call.1} parent=31 // pred_check_branch
          %185 = sbr.rel (%p183) target = $region36
        $region35: #{tpu_custom_call.1} parent=31 // pred_region
          %186 = dma.done %s179, 128
        $region36: #{tpu_custom_call.1} parent=31 // pred_fallthru
          _
        %s187 = sand.u32 %s42, 1
        %s188 = scalar_lea.sflag [#allocation3], %s187
        %s189 = sand.u32 %s42, 1
        %s190 = smul.addr %s189, 8
        %s191 = scalar_lea.vmem [#allocation2], %s190
        %p192 = pneg %p55
        %p193 = pneg %p52
        %p194 = pneg %p76
        %p195 = pneg %p73
        %p196 = pneg %p97
        %p197 = pneg %p94
        %p198 = pneg %p125
        %p199 = pneg %p122
        %s200 = sand.u32 %s112, 1
        %s201 = scalar_lea.sflag [#allocation4], %s200
        %s202 = sand.u32 %s112, 1
        %s203 = smul.addr %s202, 8
        %s204 = scalar_lea.vmem [#allocation5], %s203
        %s205 = smul.u32 2, %s25
        %s206 = smul.u32 2, %s25
        %v207 = vld [vmem:[%s182] sm:$0xff]
        %v209 = vcombine.high %v207, %v207
        %vm211 = vcmask 1043456
        %v212 = vsel %vm211, %v207, 0.0
        %v213 = vrot.slane %v212, 4
        %v214 = vadd.f32 %v212, %v213
        %v215 = vrot.slane %v214, 2
        %v216 = vadd.f32 %v214, %v215
        %v217 = vrot.slane %v216, 1
        %v218 = vadd.f32 %v216, %v217
        %v219 = vsel %vm211, %v209, 0.0
        %v220 = vrot.slane %v219, 4
        %v221 = vadd.f32 %v219, %v220
        %v222 = vrot.slane %v221, 2
        %v223 = vadd.f32 %v221, %v222
        %v224 = vrot.slane %v223, 1
        %v225 = vadd.f32 %v223, %v224
        %v226 = vmul.f32 %v218, 0.25
        %v227 = vmul.f32 %v225, 0.25
        %v230 = vcombine.low %v226, %v227
        %v232 = vsub.f32 %v207, %v230
        %v233 = vmul.f32 %v232, %v232
        %v235 = vcombine.high %v233, %v233
        %v237 = vsel %vm211, %v233, 0.0
        %v238 = vrot.slane %v237, 4
        %v239 = vadd.f32 %v237, %v238
        %v240 = vrot.slane %v239, 2
        %v241 = vadd.f32 %v239, %v240
        %v242 = vrot.slane %v241, 1
        %v243 = vadd.f32 %v241, %v242
        %v244 = vsel %vm211, %v235, 0.0
        %v245 = vrot.slane %v244, 4
        %v246 = vadd.f32 %v244, %v245
        %v247 = vrot.slane %v246, 2
        %v248 = vadd.f32 %v246, %v247
        %v249 = vrot.slane %v248, 1
        %v250 = vadd.f32 %v248, %v249
        %v251 = vmul.f32 %v243, 0.25
        %v252 = vmul.f32 %v250, 0.25
        %v253 = vadd.f32 %v251, 1e-05
        %v254 = vadd.f32 %v252, 1e-05
        %v255 = vrsqrt.pop %v253
        %v256 = vrsqrt.pop %v254
        %v259 = vcombine.low %v255, %v256
        %v261 = vmul.f32 %v232, %v259
        %v262 = vld [vmem:[%s1] sm:$0xf]
        %264 = vset.pattern.permute.xlu0 0
        %265 = vperm.xlu0 %264, %v262
        %v266 = vpop.permute.xlu0 %265
        %v269 = vlaneseq
        %v270 = vshrl.u32 %v269, 7
        %v271 = vsub.s32 0, %v270
        %v272 = vrot.slane %v261, %v271
        %v273 = vlaneseq
        %v274 = vshrl.u32 %v273, 7
        %v275 = vsub.s32 4, %v274
        %v276 = vrot.slane %v261, %v275
        %v279 = vlaneseq
        %v280 = vshrl.u32 %v279, 7
        %v281 = vsub.s32 0, %v280
        %v282 = vrot.slane %v272, %v281
        %v283 = vlaneseq
        %v284 = vshrl.u32 %v283, 7
        %v285 = vsub.s32 0, %v284
        %v286 = vrot.slane %v276, %v285
        %v287 = vmul.f32 %v266, %v282
        %v288 = vmul.f32 %v266, %v286
        %v289 = vadd.f32 %v287, 0.0
        %v290 = vadd.f32 %v288, 0.0
        %291 = vset.pattern.permute.xlu0 1
        %292 = vperm.xlu0 %291, %v262
        %v293 = vpop.permute.xlu0 %292
        %v295 = vlaneseq
        %v296 = vshrl.u32 %v295, 7
        %v297 = vsub.s32 1, %v296
        %v298 = vrot.slane %v261, %v297
        %v299 = vlaneseq
        %v300 = vshrl.u32 %v299, 7
        %v301 = vsub.s32 5, %v300
        %v302 = vrot.slane %v261, %v301
        %v305 = vlaneseq
        %v306 = vshrl.u32 %v305, 7
        %v307 = vsub.s32 1, %v306
        %v308 = vrot.slane %v298, %v307
        %v309 = vlaneseq
        %v310 = vshrl.u32 %v309, 7
        %v311 = vsub.s32 1, %v310
        %v312 = vrot.slane %v302, %v311
        %v313 = vmul.f32 %v293, %v308
        %v314 = vmul.f32 %v293, %v312
        %v315 = vadd.f32 %v289, %v313
        %v316 = vadd.f32 %v290, %v314
        %317 = vset.pattern.permute.xlu0 2
        %318 = vperm.xlu0 %317, %v262
        %v319 = vpop.permute.xlu0 %318
        %v321 = vlaneseq
        %v322 = vshrl.u32 %v321, 7
        %v323 = vsub.s32 2, %v322
        %v324 = vrot.slane %v261, %v323
        %v325 = vlaneseq
        %v326 = vshrl.u32 %v325, 7
        %v327 = vsub.s32 6, %v326
        %v328 = vrot.slane %v261, %v327
        %v331 = vlaneseq
        %v332 = vshrl.u32 %v331, 7
        %v333 = vsub.s32 2, %v332
        %v334 = vrot.slane %v324, %v333
        %v335 = vlaneseq
        %v336 = vshrl.u32 %v335, 7
        %v337 = vsub.s32 2, %v336
        %v338 = vrot.slane %v328, %v337
        %v339 = vmul.f32 %v319, %v334
        %v340 = vmul.f32 %v319, %v338
        %v341 = vadd.f32 %v315, %v339
        %v342 = vadd.f32 %v316, %v340
        %343 = vset.pattern.permute.xlu0 3
        %344 = vperm.xlu0 %343, %v262
        %v345 = vpop.permute.xlu0 %344
        %v347 = vlaneseq
        %v348 = vshrl.u32 %v347, 7
        %v349 = vsub.s32 3, %v348
        %v350 = vrot.slane %v261, %v349
        %v351 = vlaneseq
        %v352 = vshrl.u32 %v351, 7
        %v353 = vsub.s32 7, %v352
        %v354 = vrot.slane %v261, %v353
        %v357 = vlaneseq
        %v358 = vshrl.u32 %v357, 7
        %v359 = vsub.s32 3, %v358
        %v360 = vrot.slane %v350, %v359
        %v361 = vlaneseq
        %v362 = vshrl.u32 %v361, 7
        %v363 = vsub.s32 3, %v362
        %v364 = vrot.slane %v354, %v363
        %v365 = vmul.f32 %v345, %v360
        %v366 = vmul.f32 %v345, %v364
        %v367 = vadd.f32 %v341, %v365
        %v368 = vadd.f32 %v342, %v366
        %v369 = vld [vmem:[%s2] sm:$0xf]
        %371 = vset.pattern.permute.xlu0 0
        %372 = vperm.xlu0 %371, %v369
        %v373 = vpop.permute.xlu0 %372
        %v375 = vadd.f32 %v367, %v373
        %v376 = vadd.f32 %v368, %v373
        %v379 = vcombine.low %v375, %v376
        %381 = vst [vmem:[%s204] sm:$0xff] %v379
        %s382 = sand.u32 %s112, 1
        %s383 = scalar_lea.sflag [#allocation4], %s382
        %s384 = sand.u32 %s112, 1
        %s385 = smul.addr %s384, 8
        %s386 = scalar_lea.vmem [#allocation5], %s385
        // Predicated region
        $region37: #{tpu_custom_call.1} parent=31 // pred_check
          %p387 = pneg %p122
        $region38: #{tpu_custom_call.1} parent=31 // pred_check_branch
          %389 = sbr.rel (%p387) target = $region40
        $region39: #{tpu_custom_call.1} parent=31 // pred_region
          %s390 = smul.u32 2, %s25
          %s392 = ssub.s32 128, 128
          %393 = vsyncadd %s383, %s392
          %s394 = smul.addr %s24, 2
          %s395 = sadd.s32 %s390, %s394
          %s396 = smul.addr %s395, 64
          %s397 = scalar_lea.hbm %s3, %s396
          %s399 = sshll.u32 %s386, 4
          %s400 = int_to_ptr.vmem [resolvable:$true] %s399
          %402 = dma.vmem_to_hbm [thread:$0]  %s400, 128, %s397, %s383
        $region40: #{tpu_custom_call.1} parent=31 // pred_fallthru
          _
      $region32: #{tpu_custom_call.1} parent=5 // pred_fallthru
        _
      %p403 = scmp.le.s32.totalorder 2, %s15
      // Predicated region
      $region41: #{tpu_custom_call.1} parent=5 // pred_check
        %p404 = pneg %p403
      $region42: #{tpu_custom_call.1} parent=5 // pred_check_branch
        %406 = sbr.rel (%p404) target = $region44
      $region43: #{tpu_custom_call.1} parent=5 // pred_region
        %s407 = ssub.s32 %s15, 2
        // Predicated region
        $region45: #{tpu_custom_call.1} parent=43 // pred_check
          %p408 = pneg %p128
        $region46: #{tpu_custom_call.1} parent=43 // pred_check_branch
          %410 = sbr.rel (%p408) target = $region48
        $region47: #{tpu_custom_call.1} parent=43 // pred_region
          %s411 = sand.u32 %s113, 1
          %s412 = scalar_lea.sflag [#allocation4], %s411
          %s413 = sand.u32 %s113, 1
          %s414 = smul.addr %s413, 8
          %s415 = scalar_lea.vmem [#allocation5], %s414
          %416 = dma.done %s412, 128
        $region48: #{tpu_custom_call.1} parent=43 // pred_fallthru
          _
      $region44: #{tpu_custom_call.1} parent=5 // pred_fallthru
        _
    $region6: #{tpu_custom_call.1} parent=1 // loop_footer
      %s19 = sadd.s32 1, %s15
    $region7: #{tpu_custom_call.1} parent=1 // loop_footer_branch
      %14 = sbr.rel target = $region3
    $region8: #{tpu_custom_call.1} parent=1 // loop_exit
      _
    %417 = vsyncpa [#allocation3], 1
    %s418 = scalar_lea.sflag [#allocation3], 1
    %419 = vsyncpa %s418, 1
    %420 = vsyncpa [#allocation4], 1
    %s421 = scalar_lea.sflag [#allocation4], 1
    %422 = vsyncpa %s421, 1

</llo_original>
